<compile_context>
chip_gen: v5e
topology: v5e:2x2
jax: 0.10.0
libtpu: 0.0.40
codegen_flags: <defaults>
</compile_context>

<pallas_src>
import functools

import jax
import jax.numpy as jnp
from jax.experimental import pallas as pl
from jax.experimental.pallas import tpu as pltpu


def _round_up(x, m):
    return (x + m - 1) // m * m


def _cdiv(a, b):
    return (a + b - 1) // b


def _fcn_kernel(x_ref, w1_ref, b1_ref, w2_ref, b2_ref, w3_ref, b3_ref, o_ref):
    # fc1 + ReLU   (dropout -> identity in eval mode)
    h1 = jnp.dot(x_ref[...], w1_ref[...], preferred_element_type=jnp.float32)
    h1 = jnp.maximum(h1 + b1_ref[...], 0.0)
    # fc2 + ReLU   (dropout -> identity in eval mode)
    h2 = jnp.dot(h1.astype(w2_ref.dtype), w2_ref[...],
                 preferred_element_type=jnp.float32)
    h2 = jnp.maximum(h2 + b2_ref[...], 0.0)
    # fc3 (logits) -- lane-dense (padded-C) store in the compute dtype
    out = jnp.dot(h2.astype(w3_ref.dtype), w3_ref[...],
                  preferred_element_type=jnp.float32) + b3_ref[...]
    o_ref[...] = out.astype(o_ref.dtype)


def prepare_fcn_params(params, compute_dtype=jnp.bfloat16):
    """One-time preparation: lane-pad feature dims and cast weights.

    params: dict with w1 (D,H), b1 (1,H), w2 (H,H), b2 (1,H), w3 (H,C), b3 (1,C)
            (weights already transposed to (in, out)).
    Returns a dict of padded device arrays (weights in compute_dtype, biases f32).
    """
    w1, b1 = params["w1"], params["b1"]
    w2, b2 = params["w2"], params["b2"]
    w3, b3 = params["w3"], params["b3"]
    D, H = w1.shape
    C = w3.shape[1]

    Hp = _round_up(max(H, 128), 128)
    Cp = _round_up(max(C, 128), 128)

    cd = compute_dtype
    return {
        "w1": jnp.zeros((D, Hp), cd).at[:, :H].set(w1.astype(cd)),
        "w2": jnp.zeros((Hp, Hp), cd).at[:H, :H].set(w2.astype(cd)),
        "w3": jnp.zeros((Hp, Cp), cd).at[:H, :C].set(w3.astype(cd)),
        # biases stay f32: added to the f32 MXU accumulator on the VPU
        "b1": jnp.zeros((1, Hp), jnp.float32).at[:, :H].set(b1.astype(jnp.float32)),
        "b2": jnp.zeros((1, Hp), jnp.float32).at[:, :H].set(b2.astype(jnp.float32)),
        "b3": jnp.zeros((1, Cp), jnp.float32).at[:, :C].set(b3.astype(jnp.float32)),
    }


@functools.partial(jax.jit, static_argnames=("n_classes", "block_b"))
def fcn_forward(x, prep, *, n_classes, block_b=1024):
    """x: (B, dim_state).  prep: output of prepare_fcn_params."""
    w1p, b1p = prep["w1"], prep["b1"]
    w2p, b2p = prep["w2"], prep["b2"]
    w3p, b3p = prep["w3"], prep["b3"]

    B, D = x.shape
    assert D == w1p.shape[0], (D, w1p.shape)
    Hp = w1p.shape[1]
    Cp = w3p.shape[1]
    cd = w1p.dtype

    # ---- batch tiling -------------------------------------------------------
    # Big tiles (step-overhead-bound regime), but keep >=2 grid steps whenever
    # the batch can be split so v7x's two TensorCores both get work.
    B8 = _round_up(B, 8)
    bb = min(_round_up(int(block_b), 8), B8)
    n_steps = _cdiv(B8, bb)
    if n_steps == 1 and B8 >= 16:
        n_steps = 2
    bb = _round_up(_cdiv(B8, n_steps), 8)
    Bp = _cdiv(B, bb) * bb
    grid = (Bp // bb,)

    # Only pad x when the batch doesn't divide into the tile exactly.
    xp = x if Bp == B else jnp.zeros((Bp, D), x.dtype).at[:B].set(x)
    xp = xp.astype(cd)

    # Weights/biases are small: replicate the full (padded) arrays every step.
    full = lambda shape: pl.BlockSpec(shape, lambda i: (0,) * len(shape))

    out = pl.pallas_call(
        _fcn_kernel,
        out_shape=jax.ShapeDtypeStruct((Bp, Cp), cd),
        grid_spec=pltpu.PrefetchScalarGridSpec(
            num_scalar_prefetch=0,
            grid=grid,
            in_specs=[
                pl.BlockSpec((bb, D), lambda i: (i, 0)),   # x tile
                full((D, Hp)), full((1, Hp)),              # fc1
                full((Hp, Hp)), full((1, Hp)),             # fc2
                full((Hp, Cp)), full((1, Cp)),             # fc3
            ],
            out_specs=pl.BlockSpec((bb, Cp), lambda i: (i, 0)),
        ),
        compiler_params=pltpu.CompilerParams(
            dimension_semantics=("parallel",),
        ),
    )(xp, w1p, b1p, w2p, b2p, w3p, b3p)

    # Callers that can consume the padded (Bp, Cp) block directly should do so
    # to skip this extra HBM round trip; sliced here for a drop-in result.
    return out[:B, :n_classes]


def init_fcn_params(key, dim_state=8, hidden_layers=32, n_classes=4):
    """Deterministic init mimicking nn.Linear default: U(-1/sqrt(fan_in), +)."""
    ks = jax.random.split(key, 6)

    def linear(kw, kb, fan_in, fan_out):
        bound = 1.0 / jnp.sqrt(fan_in)
        # stored already transposed to (in, out) for the kernel
        w = jax.random.uniform(kw, (fan_in, fan_out), jnp.float32, -bound, bound)
        b = jax.random.uniform(kb, (1, fan_out), jnp.float32, -bound, bound)
        return w, b

    w1, b1 = linear(ks[0], ks[1], dim_state, hidden_layers)
    w2, b2 = linear(ks[2], ks[3], hidden_layers, hidden_layers)
    w3, b3 = linear(ks[4], ks[5], hidden_layers, n_classes)
    return {"w1": w1, "b1": b1, "w2": w2, "b2": b2, "w3": w3, "b3": b3}


def fcn_reference(x, params):
    """Pure-JAX reference of the same forward pass (eval-mode dropout)."""
    h = jnp.maximum(x @ params["w1"] + params["b1"], 0.0)
    h = jnp.maximum(h @ params["w2"] + params["b2"], 0.0)
    return h @ params["w3"] + params["b3"]


if __name__ == "__main__":
    key = jax.random.PRNGKey(0)
    kx, kp, kx2 = jax.random.split(key, 3)

    dim_state, hidden, n_classes = 8, 32, 4
    params = init_fcn_params(kp, dim_state=dim_state,
                             hidden_layers=hidden, n_classes=n_classes)

    # One-time param preparation (the hot path reuses these).
    prep_f32 = prepare_fcn_params(params, compute_dtype=jnp.float32)
    prep_bf16 = prepare_fcn_params(params)   # bf16 default

    # Small-shape correctness check (batch=8), f32 path, tight tolerance.
    batch = 8
    x = jax.random.normal(kx, (batch, dim_state), jnp.float32)
    out = jax.block_until_ready(fcn_forward(x, prep_f32, n_classes=n_classes))
    ref = fcn_reference(x, params)
    assert out.shape == (batch, n_classes), out.shape
    assert jnp.allclose(out, ref, atol=1e-5, rtol=1e-5), "f32 mismatch vs reference"

    # Larger batch: exercises >=2 "parallel" grid steps (v7x dual-TC sharding).
    big_batch = 512
    x2 = jax.random.normal(kx2, (big_batch, dim_state), jnp.float32)

    # f32 path, tiled, exact.
    out_f32 = jax.block_until_ready(fcn_forward(x2, prep_f32, n_classes=n_classes))
    ref2 = fcn_reference(x2, params)
    assert out_f32.shape == (big_batch, n_classes), out_f32.shape
    assert jnp.allclose(out_f32, ref2, atol=1e-5, rtol=1e-5), "tiled f32 mismatch"

    # Default bf16 path (bf16 MXU operands + bf16 logits writeback), loose tol.
    out_bf16 = jax.block_until_ready(fcn_forward(x2, prep_bf16, n_classes=n_classes))
    assert out_bf16.shape == (big_batch, n_classes), out_bf16.shape
    assert jnp.allclose(out_bf16.astype(jnp.float32), ref2,
                        atol=1e-1, rtol=1e-1), "bf16 mismatch"

    print("KERNEL_OK")
</pallas_src>

<mosaic_0001>
module attributes {stable_mosaic.version = 11 : i64} {
  func.func @_fcn_kernel(%arg0: i32, %arg1: memref<8x8xf32, #tpu.memory_space<vmem>>, %arg2: memref<8x128xf32, #tpu.memory_space<vmem>>, %arg3: memref<1x128xf32, #tpu.memory_space<vmem>>, %arg4: memref<128x128xf32, #tpu.memory_space<vmem>>, %arg5: memref<1x128xf32, #tpu.memory_space<vmem>>, %arg6: memref<128x128xf32, #tpu.memory_space<vmem>>, %arg7: memref<1x128xf32, #tpu.memory_space<vmem>>, %arg8: memref<8x128xf32, #tpu.memory_space<vmem>>) attributes {dimension_semantics = [#tpu.dimension_semantics<parallel>], iteration_bounds = array<i64: 1>, scalar_prefetch = 0 : i64, scratch_operands = 0 : i64, tpu.core_type = #tpu.core_type<tc>, window_params = [{transform_indices = @transform_0, window_bounds = array<i64: 8, 8>}, {pipeline_mode = #tpu.pipeline_mode<synchronous>, transform_indices = @transform_1, window_bounds = array<i64: 8, 128>}, {pipeline_mode = #tpu.pipeline_mode<synchronous>, transform_indices = @transform_2, window_bounds = array<i64: 1, 128>}, {pipeline_mode = #tpu.pipeline_mode<synchronous>, transform_indices = @transform_3, window_bounds = array<i64: 128, 128>}, {pipeline_mode = #tpu.pipeline_mode<synchronous>, transform_indices = @transform_4, window_bounds = array<i64: 1, 128>}, {pipeline_mode = #tpu.pipeline_mode<synchronous>, transform_indices = @transform_5, window_bounds = array<i64: 128, 128>}, {pipeline_mode = #tpu.pipeline_mode<synchronous>, transform_indices = @transform_6, window_bounds = array<i64: 1, 128>}, {transform_indices = @transform_7, window_bounds = array<i64: 8, 128>}]} {
    %c0 = arith.constant 0 : index
    %c0_0 = arith.constant 0 : index
    %0 = vector.load %arg1[%c0, %c0_0] : memref<8x8xf32, #tpu.memory_space<vmem>>, vector<8x8xf32>
    %c0_1 = arith.constant 0 : index
    %c0_2 = arith.constant 0 : index
    %1 = vector.load %arg2[%c0_1, %c0_2] : memref<8x128xf32, #tpu.memory_space<vmem>>, vector<8x128xf32>
    %cst = arith.constant dense<0.000000e+00> : vector<8x128xf32>
    %2 = tpu.matmul %0, %1, %cst {dimension_numbers = #tpu.dot_dimension_numbers<[1], [0], [0], [1], [0, 0, 1, 1], [], []>} : vector<8x8xf32>, vector<8x128xf32>, vector<8x128xf32> -> vector<8x128xf32>
    %c0_3 = arith.constant 0 : index
    %c0_4 = arith.constant 0 : index
    %3 = vector.load %arg3[%c0_3, %c0_4] : memref<1x128xf32, #tpu.memory_space<vmem>>, vector<1x128xf32>
    %4 = vector.broadcast %3 : vector<1x128xf32> to vector<8x128xf32>
    %5 = arith.addf %2, %4 : vector<8x128xf32>
    %cst_5 = arith.constant 0.000000e+00 : f32
    %6 = vector.broadcast %cst_5 : f32 to vector<8x128xf32>
    %7 = arith.maximumf %5, %6 : vector<8x128xf32>
    %c0_6 = arith.constant 0 : index
    %c0_7 = arith.constant 0 : index
    %8 = vector.load %arg4[%c0_6, %c0_7] : memref<128x128xf32, #tpu.memory_space<vmem>>, vector<128x128xf32>
    %cst_8 = arith.constant dense<0.000000e+00> : vector<8x128xf32>
    %9 = tpu.matmul %7, %8, %cst_8 {dimension_numbers = #tpu.dot_dimension_numbers<[1], [0], [0], [1], [0, 0, 1, 1], [], []>} : vector<8x128xf32>, vector<128x128xf32>, vector<8x128xf32> -> vector<8x128xf32>
    %c0_9 = arith.constant 0 : index
    %c0_10 = arith.constant 0 : index
    %10 = vector.load %arg5[%c0_9, %c0_10] : memref<1x128xf32, #tpu.memory_space<vmem>>, vector<1x128xf32>
    %11 = vector.broadcast %10 : vector<1x128xf32> to vector<8x128xf32>
    %12 = arith.addf %9, %11 : vector<8x128xf32>
    %cst_11 = arith.constant 0.000000e+00 : f32
    %13 = vector.broadcast %cst_11 : f32 to vector<8x128xf32>
    %14 = arith.maximumf %12, %13 : vector<8x128xf32>
    %c0_12 = arith.constant 0 : index
    %c0_13 = arith.constant 0 : index
    %15 = vector.load %arg6[%c0_12, %c0_13] : memref<128x128xf32, #tpu.memory_space<vmem>>, vector<128x128xf32>
    %cst_14 = arith.constant dense<0.000000e+00> : vector<8x128xf32>
    %16 = tpu.matmul %14, %15, %cst_14 {dimension_numbers = #tpu.dot_dimension_numbers<[1], [0], [0], [1], [0, 0, 1, 1], [], []>} : vector<8x128xf32>, vector<128x128xf32>, vector<8x128xf32> -> vector<8x128xf32>
    %c0_15 = arith.constant 0 : index
    %c0_16 = arith.constant 0 : index
    %17 = vector.load %arg7[%c0_15, %c0_16] : memref<1x128xf32, #tpu.memory_space<vmem>>, vector<1x128xf32>
    %18 = vector.broadcast %17 : vector<1x128xf32> to vector<8x128xf32>
    %19 = arith.addf %16, %18 : vector<8x128xf32>
    %c0_17 = arith.constant 0 : index
    %c0_18 = arith.constant 0 : index
    %20 = vector.load %arg8[%c0_17, %c0_18] : memref<8x128xf32, #tpu.memory_space<vmem>>, vector<8x128xf32>
    tpu.vector_store %arg8[%c0_17, %c0_18], %19 {strides = array<i32>} : memref<8x128xf32, #tpu.memory_space<vmem>>, vector<8x128xf32>,
    return
  }
  func.func @transform_0(%arg0: i32) -> (i32, i32) {
    %c0_i32 = arith.constant 0 : i32
    %c0_i32_0 = arith.constant 0 : i32
    return %arg0, %c0_i32 : i32, i32
  }
  func.func @transform_1(%arg0: i32) -> (i32, i32) {
    %c0_i32 = arith.constant 0 : i32
    %c0_i32_0 = arith.constant 0 : i32
    %c0_i32_1 = arith.constant 0 : i32
    return %c0_i32, %c0_i32_0 : i32, i32
  }
  func.func @transform_2(%arg0: i32) -> (i32, i32) {
    %c0_i32 = arith.constant 0 : i32
    %c0_i32_0 = arith.constant 0 : i32
    %c0_i32_1 = arith.constant 0 : i32
    return %c0_i32, %c0_i32_0 : i32, i32
  }
  func.func @transform_3(%arg0: i32) -> (i32, i32) {
    %c0_i32 = arith.constant 0 : i32
    %c0_i32_0 = arith.constant 0 : i32
    %c0_i32_1 = arith.constant 0 : i32
    return %c0_i32, %c0_i32_0 : i32, i32
  }
  func.func @transform_4(%arg0: i32) -> (i32, i32) {
    %c0_i32 = arith.constant 0 : i32
    %c0_i32_0 = arith.constant 0 : i32
    %c0_i32_1 = arith.constant 0 : i32
    return %c0_i32, %c0_i32_0 : i32, i32
  }
  func.func @transform_5(%arg0: i32) -> (i32, i32) {
    %c0_i32 = arith.constant 0 : i32
    %c0_i32_0 = arith.constant 0 : i32
    %c0_i32_1 = arith.constant 0 : i32
    return %c0_i32, %c0_i32_0 : i32, i32
  }
  func.func @transform_6(%arg0: i32) -> (i32, i32) {
    %c0_i32 = arith.constant 0 : i32
    %c0_i32_0 = arith.constant 0 : i32
    %c0_i32_1 = arith.constant 0 : i32
    return %c0_i32, %c0_i32_0 : i32, i32
  }
  func.func @transform_7(%arg0: i32) -> (i32, i32) {
    %c0_i32 = arith.constant 0 : i32
    %c0_i32_0 = arith.constant 0 : i32
    return %arg0, %c0_i32 : i32, i32
  }
}

</mosaic_0001>

<llo_original>
// kernel: fcn_forward.1
$region0: #{fcn_forward.1}
  #allocation0 [shape = 'u32[]', space=smem, size = 0x4, offset = 0x4, fixed_abs, tag = 'smem constant byte address 0x4 - core index']
  #allocation1 [shape = 'u32[72,128]{1,0:T(1,128)}', space=vmem, size = 0x9000, scoped, tag = 'internal scratch']
  %s0 = inlined_call_operand.hbm [shape: f32[8,8], index: 0, kind: input, shape index: {}]
  %s1 = inlined_call_operand.hbm [shape: f32[8,128], index: 1, kind: input, shape index: {}]
  %s2 = inlined_call_operand.hbm [shape: f32[1,128], index: 2, kind: input, shape index: {}]
  %s3 = inlined_call_operand.hbm [shape: f32[128,128], index: 3, kind: input, shape index: {}]
  %s4 = inlined_call_operand.vmem [shape: f32[1,128], index: 4, kind: input, shape index: {}]
  %s5 = inlined_call_operand.hbm [shape: f32[128,128], index: 5, kind: input, shape index: {}]
  %s6 = inlined_call_operand.vmem [shape: f32[1,128], index: 6, kind: input, shape index: {}]
  %s7 = inlined_call_operand.vmem [shape: f32[8,128], index: 7, kind: output, shape index: {}]
  %s8 = sld [smem:[#allocation0]]
  $region58: #{fcn_forward.1} parent=0
    _
  %s10 = ssub.s32 1, %s8
  %s11 = scalar_select 0, %s10, %s8
  $region1: #{fcn_forward.1} parent=0
    #allocation2 [shape = 'u8[4096]{0}', space=vmem, size = 0x1000, scoped, tag = 'input window, operand 0, single buffered']
    #allocation3 [shape = 's32[1]{0}', space=sflag, size = 0x4, scoped, tag = 'scoped memory for fcn_forward.1']
    #allocation4 [shape = 'u8[4096]{0}', space=vmem, size = 0x1000, scoped, tag = 'input window, operand 1, single buffered']
    #allocation5 [shape = 's32[1]{0}', space=sflag, size = 0x4, scoped, tag = 'scoped memory for fcn_forward.1']
    #allocation6 [shape = 'u8[512]{0}', space=vmem, size = 0x400, scoped, tag = 'input window, operand 2, single buffered']
    #allocation7 [shape = 'u8[65536]{0}', space=vmem, size = 0x10000, scoped, tag = 'input window, operand 3, single buffered']
    #allocation8 [shape = 's32[1]{0}', space=sflag, size = 0x4, scoped, tag = 'scoped memory for fcn_forward.1']
    #allocation9 [shape = 'u8[65536]{0}', space=vmem, size = 0x10000, scoped, tag = 'input window, operand 5, single buffered']
    %12 = vsyncpa [#allocation3], 0
    %13 = vsyncpa [#allocation5], 0
    %14 = vsyncpa [#allocation8], 0
    // Predicated region
    $region2: #{fcn_forward.1} parent=1 // pred_check
      _
    $region3: #{fcn_forward.1} parent=1 // pred_check_branch
      %16 = sbr.rel (0) target = $region5
    $region4: #{fcn_forward.1} parent=1 // pred_region
      %18 = vsyncadd [#allocation3], 0
      %s20 = sshll.u32 %s0, 4
      %s21 = int_to_ptr.hbm [resolvable:$true] %s20
      %s22 = sshll.u32 [#allocation2], 4
      %s23 = int_to_ptr.vmem [resolvable:$true] %s22
      %25 = dma.hbm_to_vmem [thread:$0]  %s21, 128, %s23, [#allocation3]
    $region5: #{fcn_forward.1} parent=1 // pred_fallthru
      _
    // Predicated region
    $region6: #{fcn_forward.1} parent=1 // pred_check
      _
    $region7: #{fcn_forward.1} parent=1 // pred_check_branch
      %27 = sbr.rel (0) target = $region9
    $region8: #{fcn_forward.1} parent=1 // pred_region
      %29 = vsyncadd [#allocation5], 0
      %s31 = sshll.u32 %s1, 4
      %s32 = int_to_ptr.hbm [resolvable:$true] %s31
      %s33 = sshll.u32 [#allocation4], 4
      %s34 = int_to_ptr.vmem [resolvable:$true] %s33
      %36 = dma.hbm_to_vmem [thread:$0]  %s32, 128, %s34, [#allocation5]
    $region9: #{fcn_forward.1} parent=1 // pred_fallthru
      _
    // Predicated region
    $region10: #{fcn_forward.1} parent=1 // pred_check
      _
    $region11: #{fcn_forward.1} parent=1 // pred_check_branch
      %38 = sbr.rel (0) target = $region13
    $region12: #{fcn_forward.1} parent=1 // pred_region
      %40 = vsyncadd [#allocation5], 0
      %s42 = sshll.u32 %s2, 4
      %s43 = int_to_ptr.hbm [resolvable:$true] %s42
      %s44 = sshll.u32 [#allocation6], 4
      %s45 = int_to_ptr.vmem [resolvable:$true] %s44
      %47 = dma.hbm_to_vmem [thread:$0]  %s43, 16, %s45, [#allocation5]
    $region13: #{fcn_forward.1} parent=1 // pred_fallthru
      _
    // Predicated region
    $region14: #{fcn_forward.1} parent=1 // pred_check
      _
    $region15: #{fcn_forward.1} parent=1 // pred_check_branch
      %49 = sbr.rel (0) target = $region17
    $region16: #{fcn_forward.1} parent=1 // pred_region
      %51 = vsyncadd [#allocation8], 0
      %s52 = sshll.u32 %s3, 4
      %s53 = int_to_ptr.hbm [resolvable:$true] %s52
      %s54 = sshll.u32 [#allocation7], 4
      %s55 = int_to_ptr.vmem [resolvable:$true] %s54
      %60 = dma.hbm_to_vmem [thread:$0]  %s53, 2048, %s55, [#allocation8], 128, 128, 8
    $region17: #{fcn_forward.1} parent=1 // pred_fallthru
      _
    // Predicated region
    $region18: #{fcn_forward.1} parent=1 // pred_check
      _
    $region19: #{fcn_forward.1} parent=1 // pred_check_branch
      %62 = sbr.rel (0) target = $region21
    $region20: #{fcn_forward.1} parent=1 // pred_region
      _
    $region21: #{fcn_forward.1} parent=1 // pred_fallthru
      _
    // Predicated region
    $region22: #{fcn_forward.1} parent=1 // pred_check
      _
    $region23: #{fcn_forward.1} parent=1 // pred_check_branch
      %64 = sbr.rel (0) target = $region25
    $region24: #{fcn_forward.1} parent=1 // pred_region
      %66 = vsyncadd [#allocation8], 0
      %s67 = sshll.u32 %s5, 4
      %s68 = int_to_ptr.hbm [resolvable:$true] %s67
      %s69 = sshll.u32 [#allocation9], 4
      %s70 = int_to_ptr.vmem [resolvable:$true] %s69
      %75 = dma.hbm_to_vmem [thread:$0]  %s68, 2048, %s70, [#allocation8], 128, 128, 8
    $region25: #{fcn_forward.1} parent=1 // pred_fallthru
      _
    // Predicated region
    $region26: #{fcn_forward.1} parent=1 // pred_check
      _
    $region27: #{fcn_forward.1} parent=1 // pred_check_branch
      %77 = sbr.rel (0) target = $region29
    $region28: #{fcn_forward.1} parent=1 // pred_region
      _
    $region29: #{fcn_forward.1} parent=1 // pred_fallthru
      _
    // Predicated region
    $region30: #{fcn_forward.1} parent=1 // pred_check
      _
    $region31: #{fcn_forward.1} parent=1 // pred_check_branch
      %79 = sbr.rel (0) target = $region33
    $region32: #{fcn_forward.1} parent=1 // pred_region
      %81 = dma.done [#allocation3], 128
    $region33: #{fcn_forward.1} parent=1 // pred_fallthru
      _
    // Predicated region
    $region34: #{fcn_forward.1} parent=1 // pred_check
      _
    $region35: #{fcn_forward.1} parent=1 // pred_check_branch
      %83 = sbr.rel (0) target = $region37
    $region36: #{fcn_forward.1} parent=1 // pred_region
      %85 = dma.done [#allocation5], 128
    $region37: #{fcn_forward.1} parent=1 // pred_fallthru
      _
    // Predicated region
    $region38: #{fcn_forward.1} parent=1 // pred_check
      _
    $region39: #{fcn_forward.1} parent=1 // pred_check_branch
      %87 = sbr.rel (0) target = $region41
    $region40: #{fcn_forward.1} parent=1 // pred_region
      %89 = dma.done [#allocation5], 16
    $region41: #{fcn_forward.1} parent=1 // pred_fallthru
      _
    // Predicated region
    $region42: #{fcn_forward.1} parent=1 // pred_check
      _
    $region43: #{fcn_forward.1} parent=1 // pred_check_branch
      %91 = sbr.rel (0) target = $region45
    $region44: #{fcn_forward.1} parent=1 // pred_region
      %93 = dma.done [#allocation8], 2048
    $region45: #{fcn_forward.1} parent=1 // pred_fallthru
      _
    // Predicated region
    $region46: #{fcn_forward.1} parent=1 // pred_check
      _
    $region47: #{fcn_forward.1} parent=1 // pred_check_branch
      %95 = sbr.rel (0) target = $region49
    $region48: #{fcn_forward.1} parent=1 // pred_region
      %97 = dma.done [#allocation8], 2048
    $region49: #{fcn_forward.1} parent=1 // pred_fallthru
      _
    %v98 = vld [vmem:[#allocation2] sm:$0xff]
    %v99 = vld [vmem:[#allocation4] sm:$0xff]
    %v100 = vld [vmem:[#allocation6] sm:$0x1]
    %v102 = vperm.slane %v100, 0
    %vm104 = vcmask 64512
    %v106 = vsel %vm104, %v98, 0
    %108 = vmatpush.msra.mxu0 0.0
    %109 = vmatpush.msra.mxu0 0.0
    %110 = vmatpush.msra.mxu0 0.0
    %111 = vmatpush.msra.mxu0 0.0
    %112 = vmatpush.msra.mxu0 0.0
    %113 = vmatpush.msra.mxu0 0.0
    %114 = vmatpush.msra.mxu0 0.0
    %115 = vmatpush.msra.mxu0 0.0
    %116 = vmatpush.msra.mxu0 0.0
    %117 = vmatpush.msra.mxu0 0.0
    %118 = vmatpush.msra.mxu0 0.0
    %119 = vmatpush.msra.mxu0 0.0
    %120 = vmatpush.msra.mxu0 0.0
    %121 = vmatpush.msra.mxu0 0.0
    %122 = vmatpush.msra.mxu0 0.0
    %123 = vmatpush.msra.mxu0 %v99
    %124 = vmatmul.f32.gmra.mxu0 %v106
    %v125 = vpop.f32.mrf.mxu0
    %v126 = vadd.f32 %v102, %v125
    %127 = vdwg.mxu0
    %v128 = vmax.f32 %v126, 0.0
    %v129 = vld [vmem:[#allocation7] sm:$0xff]
    %v130 = vld [vmem:[#allocation7 + $0x8] sm:$0xff]
    %v131 = vld [vmem:[#allocation7 + $0x10] sm:$0xff]
    %v132 = vld [vmem:[#allocation7 + $0x18] sm:$0xff]
    %v133 = vld [vmem:[#allocation7 + $0x20] sm:$0xff]
    %v134 = vld [vmem:[#allocation7 + $0x28] sm:$0xff]
    %v135 = vld [vmem:[#allocation7 + $0x30] sm:$0xff]
    %v136 = vld [vmem:[#allocation7 + $0x38] sm:$0xff]
    %v137 = vld [vmem:[#allocation7 + $0x40] sm:$0xff]
    %v138 = vld [vmem:[#allocation7 + $0x48] sm:$0xff]
    %v139 = vld [vmem:[#allocation7 + $0x50] sm:$0xff]
    %v140 = vld [vmem:[#allocation7 + $0x58] sm:$0xff]
    %v141 = vld [vmem:[#allocation7 + $0x60] sm:$0xff]
    %v142 = vld [vmem:[#allocation7 + $0x68] sm:$0xff]
    %v143 = vld [vmem:[#allocation7 + $0x70] sm:$0xff]
    %v144 = vld [vmem:[#allocation7 + $0x78] sm:$0xff]
    %v145 = vld [vmem:[%s4] sm:$0x1]
    %v147 = vperm.slane %v145, 0
    %149 = vmatpush.msra.mxu0 %v144
    %150 = vmatpush.msra.mxu0 %v143
    %151 = vmatpush.msra.mxu0 %v142
    %152 = vmatpush.msra.mxu0 %v141
    %153 = vmatpush.msra.mxu0 %v140
    %154 = vmatpush.msra.mxu0 %v139
    %155 = vmatpush.msra.mxu0 %v138
    %156 = vmatpush.msra.mxu0 %v137
    %157 = vmatpush.msra.mxu0 %v136
    %158 = vmatpush.msra.mxu0 %v135
    %159 = vmatpush.msra.mxu0 %v134
    %160 = vmatpush.msra.mxu0 %v133
    %161 = vmatpush.msra.mxu0 %v132
    %162 = vmatpush.msra.mxu0 %v131
    %163 = vmatpush.msra.mxu0 %v130
    %164 = vmatpush.msra.mxu0 %v129
    %165 = vmatmul.f32.gmra.mxu0 %v128
    %v166 = vpop.f32.mrf.mxu0
    %v167 = vadd.f32 %v147, %v166
    %168 = vdwg.mxu0
    %v169 = vmax.f32 %v167, 0.0
    %v170 = vld [vmem:[#allocation9] sm:$0xff]
    %v171 = vld [vmem:[#allocation9 + $0x8] sm:$0xff]
    %v172 = vld [vmem:[#allocation9 + $0x10] sm:$0xff]
    %v173 = vld [vmem:[#allocation9 + $0x18] sm:$0xff]
    %v174 = vld [vmem:[#allocation9 + $0x20] sm:$0xff]
    %v175 = vld [vmem:[#allocation9 + $0x28] sm:$0xff]
    %v176 = vld [vmem:[#allocation9 + $0x30] sm:$0xff]
    %v177 = vld [vmem:[#allocation9 + $0x38] sm:$0xff]
    %v178 = vld [vmem:[#allocation9 + $0x40] sm:$0xff]
    %v179 = vld [vmem:[#allocation9 + $0x48] sm:$0xff]
    %v180 = vld [vmem:[#allocation9 + $0x50] sm:$0xff]
    %v181 = vld [vmem:[#allocation9 + $0x58] sm:$0xff]
    %v182 = vld [vmem:[#allocation9 + $0x60] sm:$0xff]
    %v183 = vld [vmem:[#allocation9 + $0x68] sm:$0xff]
    %v184 = vld [vmem:[#allocation9 + $0x70] sm:$0xff]
    %v185 = vld [vmem:[#allocation9 + $0x78] sm:$0xff]
    %v186 = vld [vmem:[%s6] sm:$0x1]
    %v188 = vperm.slane %v186, 0
    %190 = vmatpush.msra.mxu0 %v185
    %191 = vmatpush.msra.mxu0 %v184
    %192 = vmatpush.msra.mxu0 %v183
    %193 = vmatpush.msra.mxu0 %v182
    %194 = vmatpush.msra.mxu0 %v181
    %195 = vmatpush.msra.mxu0 %v180
    %196 = vmatpush.msra.mxu0 %v179
    %197 = vmatpush.msra.mxu0 %v178
    %198 = vmatpush.msra.mxu0 %v177
    %199 = vmatpush.msra.mxu0 %v176
    %200 = vmatpush.msra.mxu0 %v175
    %201 = vmatpush.msra.mxu0 %v174
    %202 = vmatpush.msra.mxu0 %v173
    %203 = vmatpush.msra.mxu0 %v172
    %204 = vmatpush.msra.mxu0 %v171
    %205 = vmatpush.msra.mxu0 %v170
    %206 = vmatmul.f32.gmra.mxu0 %v169
    %v207 = vpop.f32.mrf.mxu0
    %v208 = vadd.f32 %v188, %v207
    %209 = vdwg.mxu0
    %210 = vst [vmem:[%s7] sm:$0xff] %v208
    // Predicated region
    $region50: #{fcn_forward.1} parent=1 // pred_check
      _
    $region51: #{fcn_forward.1} parent=1 // pred_check_branch
      %212 = sbr.rel (0) target = $region53
    $region52: #{fcn_forward.1} parent=1 // pred_region
      _
    $region53: #{fcn_forward.1} parent=1 // pred_fallthru
      _
    // Predicated region
    $region54: #{fcn_forward.1} parent=1 // pred_check
      _
    $region55: #{fcn_forward.1} parent=1 // pred_check_branch
      %214 = sbr.rel (0) target = $region57
    $region56: #{fcn_forward.1} parent=1 // pred_region
      _
    $region57: #{fcn_forward.1} parent=1 // pred_fallthru
      _
    %215 = vsyncpa [#allocation3], 1
    %216 = vsyncpa [#allocation5], 1
    %217 = vsyncpa [#allocation8], 1

</llo_original>
